<compile_context>
chip_gen: v6e
topology: v6e:2x2x1
jax: 0.10.0
libtpu: 0.0.40
codegen_flags: <defaults>
</compile_context>

<pallas_src>
import functools
import math

import jax
import jax.numpy as jnp
from jax.experimental import pallas as pl
from jax.experimental.pallas import tpu as pltpu


_RCE_MAX = -math.log(1e-7)  # upper bound of -log(clamp(p, 1e-7, 1.0))


# ----------------------------- kernel helpers --------------------------------

def _per_sample_losses(x, t, alpha, beta):
    """Per-sample symmetric CE.

    x: (C, R, 128) logits (any float dtype, upcast here), t: (R, 128) int32 targets.
    Returns (R, 128) float32 losses: alpha*ce + beta*rce.
    All class reductions are over the leading axis -> elementwise VPU ops over C planes.
    """
    x = x.astype(jnp.float32)
    m = jnp.max(x, axis=0)                                     # (R, 128)
    s = jnp.sum(jnp.exp(x - m), axis=0)                        # (R, 128)
    cls = jax.lax.broadcasted_iota(jnp.int32, x.shape, 0)      # class index per plane
    x_t = jnp.sum(jnp.where(cls == t, x, 0.0), axis=0)         # target logit, (R, 128)
    ce = (m - x_t) + jnp.log(s)                                # -log_softmax[target]
    rce = jnp.clip(ce, 0.0, _RCE_MAX)                          # == -log(clamp(p_t,1e-7,1))
    return alpha * ce + beta * rce


# ------------------------------ Pallas kernels --------------------------------

def sce_reduce_kernel(logits_ref, targets_ref, out_ref, *,
                      n_valid, tb, bpp, alpha, beta, needs_mask):
    """Fused symmetric CE, reduction='mean'/'sum'.

    Grid = (num_partitions [parallel], blocks_per_partition [arbitrary]).
    out_ref is the (R,128) per-partition accumulator block: revisited across the
    arbitrary axis, zeroed at j==0, summed (and scaled) in the wrapper epilogue.
    """
    j = pl.program_id(1)

    @pl.when(j == 0)
    def _init():
        out_ref[...] = jnp.zeros_like(out_ref)

    loss = _per_sample_losses(logits_ref[...], targets_ref[...], alpha, beta)

    if needs_mask:
        i = pl.program_id(0)
        b = i * bpp + j                      # global (unclamped) block index
        start = b * tb                       # first sample covered by this block

        @pl.when(start + tb <= n_valid)      # fully valid block: fast path
        def _full():
            out_ref[...] += loss

        @pl.when(start + tb > n_valid)       # ragged / phantom block: mask rows
        def _ragged():
            r = jax.lax.broadcasted_iota(jnp.int32, loss.shape, 0)
            l = jax.lax.broadcasted_iota(jnp.int32, loss.shape, 1)
            idx = start + r * 128 + l
            out_ref[...] += jnp.where(idx < n_valid, loss, 0.0)
    else:
        out_ref[...] += loss


def sce_none_kernel(logits_ref, targets_ref, out_ref, *, alpha, beta):
    """reduction='none': per-sample loss, lane-dense (R,128) output block per step."""
    out_ref[...] = _per_sample_losses(logits_ref[...], targets_ref[...], alpha, beta)


# --------------------------------- wrapper ------------------------------------

def _round_up(x, m):
    return (x + m - 1) // m * m


@functools.partial(
    jax.jit,
    static_argnames=("alpha", "beta", "reduction", "block_elems", "num_partitions"))
def symmetric_cross_entropy(logits, targets, *, alpha, beta, reduction="mean",
                            block_elems=65536, num_partitions=2):
    """Pallas TPU forward of SymmetricCrossEntropy(alpha, beta).

    logits: (N, C) float (f32 or bf16 -- kept native, upcast in-kernel)
    targets: (N,) int
    block_elems: samples per grid step (lane-dense); num_partitions: parallel
    partitions for the mean/sum reduction (2 uses both v7x TensorCores).
    """
    n, c = logits.shape
    n128 = _round_up(n, 128)
    nb = n128 // 128

    # Lane-dense layout: classes -> leading planes, batch -> (sublane, lane) grid.
    # Single pad(<=127 rows)+transpose copy; sample index = row*128 + lane.
    lt = jnp.pad(logits, ((0, n128 - n), (0, 0))).T.reshape(c, nb, 128)
    tt = jnp.pad(targets.astype(jnp.int32), (0, n128 - n)).reshape(nb, 128)

    # Rows (of 128 samples) per block: multiple of 8, or the full row count if small.
    r_req = max(8, (max(1, block_elems // 128) // 8) * 8)
    R = nb if nb <= r_req else r_req
    nb_blocks = pl.cdiv(nb, R)
    tb = R * 128                                   # samples per block

    if reduction == "none":
        kernel = functools.partial(sce_none_kernel,
                                   alpha=float(alpha), beta=float(beta))
        out = pl.pallas_call(
            kernel,
            out_shape=jax.ShapeDtypeStruct((nb, 128), jnp.float32),
            grid=(nb_blocks,),
            in_specs=[pl.BlockSpec((c, R, 128), lambda b: (0, b, 0)),
                      pl.BlockSpec((R, 128), lambda b: (b, 0))],
            out_specs=pl.BlockSpec((R, 128), lambda b: (b, 0)),
            compiler_params=pltpu.CompilerParams(
                dimension_semantics=("parallel",)),
        )(lt, tt)
        return out.reshape(n128)[:n]

    if reduction in ("mean", "sum"):
        num_parts = max(1, min(int(num_partitions), nb_blocks))
        bpp = pl.cdiv(nb_blocks, num_parts)        # blocks per partition
        needs_mask = (num_parts * bpp * tb != n)   # padding / phantom blocks exist

        kernel = functools.partial(
            sce_reduce_kernel, n_valid=n, tb=tb, bpp=bpp,
            alpha=float(alpha), beta=float(beta), needs_mask=needs_mask)

        # Clamp phantom block indices so the auto-DMA never goes out of range;
        # the kernel masks their contribution to zero using the unclamped index.
        def lblk(i, j):
            return (0, jnp.minimum(i * bpp + j, nb_blocks - 1), 0)

        def tblk(i, j):
            return (jnp.minimum(i * bpp + j, nb_blocks - 1), 0)

        partial_sums = pl.pallas_call(
            kernel,
            out_shape=jax.ShapeDtypeStruct((num_parts, R, 128), jnp.float32),
            grid=(num_parts, bpp),
            in_specs=[pl.BlockSpec((c, R, 128), lblk),
                      pl.BlockSpec((R, 128), tblk)],
            out_specs=pl.BlockSpec((None, R, 128), lambda i, j: (i, 0, 0)),
            compiler_params=pltpu.CompilerParams(
                dimension_semantics=("parallel", "arbitrary")),
        )(lt, tt)

        total = jnp.sum(partial_sums)              # tiny epilogue reduce
        return total / n if reduction == "mean" else total

    raise ValueError(f"unknown reduction: {reduction}")


# ------------------------------ pure-JAX reference -----------------------------

def sce_reference(logits, targets, *, alpha, beta, reduction="mean"):
    logits = logits.astype(jnp.float32)
    logp = jax.nn.log_softmax(logits, axis=-1)
    onehot = jax.nn.one_hot(targets, logits.shape[-1], dtype=jnp.float32)
    ce = -jnp.sum(onehot * logp, axis=-1)
    p = jnp.clip(jax.nn.softmax(logits, axis=-1), 1e-7, 1.0)
    rce = -jnp.sum(onehot * jnp.log(p), axis=-1)
    if reduction == "mean":
        return alpha * jnp.mean(ce) + beta * jnp.mean(rce)
    if reduction == "sum":
        return alpha * jnp.sum(ce) + beta * jnp.sum(rce)
    return alpha * ce + beta * rce


if __name__ == "__main__":
    import numpy as np

    key = jax.random.PRNGKey(0)
    k1, k2, k3, k4 = jax.random.split(key, 4)
    alpha, beta = 0.5, 1.0           # example exp_dict['loss_func'] values
    num_classes = 5

    # small shape consistent with the module: (batch, 5) logits + int targets
    logits = jax.random.normal(k1, (8, num_classes), dtype=jnp.float32)
    targets = jax.random.randint(k2, (8,), 0, num_classes)

    out = jax.block_until_ready(
        symmetric_cross_entropy(logits, targets, alpha=alpha, beta=beta))
    ref = sce_reference(logits, targets, alpha=alpha, beta=beta)
    np.testing.assert_allclose(np.asarray(out), np.asarray(ref), rtol=1e-5, atol=1e-5)

    # exercise multi-block grid, 2-way partition (phantom block), ragged masking,
    # and the lane-dense 'none' output path (N not a multiple of the block).
    logits2 = jax.random.normal(k3, (2500, num_classes), dtype=jnp.float32)
    targets2 = jax.random.randint(k4, (2500,), 0, num_classes)
    for red in ("mean", "sum", "none"):
        o = jax.block_until_ready(
            symmetric_cross_entropy(logits2, targets2, alpha=alpha, beta=beta,
                                    reduction=red, block_elems=1024))
        r = sce_reference(logits2, targets2, alpha=alpha, beta=beta, reduction=red)
        np.testing.assert_allclose(np.asarray(o), np.asarray(r), rtol=1e-5, atol=1e-5)

    print("KERNEL_OK")
</pallas_src>

<mosaic_0001>
module attributes {stable_mosaic.version = 11 : i64} {
  func.func @sce_reduce_kernel(%arg0: i32, %arg1: i32, %arg2: memref<5x1x128xf32, #tpu.memory_space<vmem>>, %arg3: memref<1x128xi32, #tpu.memory_space<vmem>>, %arg4: memref<1x1x128xf32, #tpu.memory_space<vmem>>) attributes {dimension_semantics = [#tpu.dimension_semantics<parallel>, #tpu.dimension_semantics<arbitrary>], iteration_bounds = array<i64: 1, 1>, scalar_prefetch = 0 : i64, scratch_operands = 0 : i64, tpu.core_type = #tpu.core_type<tc>, window_params = [{transform_indices = @transform_0, window_bounds = array<i64: 5, 1, 128>}, {transform_indices = @transform_1, window_bounds = array<i64: 1, 128>}, {transform_indices = @transform_2, window_bounds = array<i64: 1, 1, 128>}]} {
    %c0_i32 = arith.constant 0 : i32
    %0 = arith.cmpi eq, %arg1, %c0_i32 : i32
    %1 = arith.extui %0 : i1 to i32
    %c0_i32_0 = arith.constant 0 : i32
    %2 = arith.cmpi ne, %1, %c0_i32_0 : i32
    scf.if %2 {
      %cst_17 = arith.constant 0.000000e+00 : f32
      %41 = vector.broadcast %cst_17 : f32 to vector<1x128xf32>
      %c0_18 = arith.constant 0 : index
      %c0_19 = arith.constant 0 : index
      %c0_20 = arith.constant 0 : index
      %42 = vector.load %arg4[%c0_18, %c0_19, %c0_20] : memref<1x1x128xf32, #tpu.memory_space<vmem>>, vector<1x1x128xf32>
      %43 = vector.shape_cast %42 : vector<1x1x128xf32> to vector<1x128xf32>
      %44 = vector.shape_cast %41 : vector<1x128xf32> to vector<1x1x128xf32>
      tpu.vector_store %arg4[%c0_18, %c0_19, %c0_20], %44 {strides = array<i32>} : memref<1x1x128xf32, #tpu.memory_space<vmem>>, vector<1x1x128xf32>,
    } else {
    }
    %c0 = arith.constant 0 : index
    %c0_1 = arith.constant 0 : index
    %c0_2 = arith.constant 0 : index
    %3 = vector.load %arg2[%c0, %c0_1, %c0_2] : memref<5x1x128xf32, #tpu.memory_space<vmem>>, vector<5x1x128xf32>
    %c0_3 = arith.constant 0 : index
    %c0_4 = arith.constant 0 : index
    %4 = vector.load %arg3[%c0_3, %c0_4] : memref<1x128xi32, #tpu.memory_space<vmem>>, vector<1x128xi32>
    %cst = arith.constant dense<0xFF800000> : vector<1x128xf32>
    %5 = vector.multi_reduction <maximumf>, %3, %cst [0] : vector<5x1x128xf32> to vector<1x128xf32>
    %6 = vector.shape_cast %5 : vector<1x128xf32> to vector<1x1x128xf32>
    %7 = vector.broadcast %6 : vector<1x1x128xf32> to vector<5x1x128xf32>
    %8 = arith.subf %3, %7 : vector<5x1x128xf32>
    %9 = math.exp %8 : vector<5x1x128xf32>
    %cst_5 = arith.constant dense<0.000000e+00> : vector<1x128xf32>
    %10 = vector.multi_reduction <add>, %9, %cst_5 [0] : vector<5x1x128xf32> to vector<1x128xf32>
    %11 = tpu.iota {dimensions = array<i32: 0>} : vector<5x1x128xi32>
    %12 = vector.shape_cast %4 : vector<1x128xi32> to vector<1x1x128xi32>
    %13 = vector.broadcast %12 : vector<1x1x128xi32> to vector<5x1x128xi32>
    %14 = arith.cmpi eq, %11, %13 : vector<5x1x128xi32>
    %cst_6 = arith.constant 0.000000e+00 : f32
    %15 = vector.broadcast %cst_6 : f32 to vector<5x1x128xf32>
    %16 = arith.select %14, %3, %15 : vector<5x1x128xi1>, vector<5x1x128xf32>
    %cst_7 = arith.constant dense<0.000000e+00> : vector<1x128xf32>
    %17 = vector.multi_reduction <add>, %16, %cst_7 [0] : vector<5x1x128xf32> to vector<1x128xf32>
    %18 = arith.subf %5, %17 : vector<1x128xf32>
    %19 = math.log %10 : vector<1x128xf32>
    %20 = arith.addf %18, %19 : vector<1x128xf32>
    %cst_8 = arith.constant 0.000000e+00 : f32
    %cst_9 = arith.constant 16.1180954 : f32
    %21 = vector.broadcast %cst_8 : f32 to vector<1x128xf32>
    %22 = arith.maximumf %21, %20 : vector<1x128xf32>
    %23 = vector.broadcast %cst_9 : f32 to vector<1x128xf32>
    %24 = arith.minimumf %23, %22 : vector<1x128xf32>
    %cst_10 = arith.constant 5.000000e-01 : f32
    %25 = vector.broadcast %cst_10 : f32 to vector<1x128xf32>
    %26 = arith.mulf %25, %20 : vector<1x128xf32>
    %cst_11 = arith.constant 1.000000e+00 : f32
    %27 = vector.broadcast %cst_11 : f32 to vector<1x128xf32>
    %28 = arith.mulf %27, %24 : vector<1x128xf32>
    %29 = arith.addf %26, %28 : vector<1x128xf32>
    %c1_i32 = arith.constant 1 : i32
    %30 = arith.muli %arg0, %c1_i32 : i32
    %31 = arith.addi %30, %arg1 : i32
    %c128_i32 = arith.constant 128 : i32
    %32 = arith.muli %31, %c128_i32 : i32
    %c128_i32_12 = arith.constant 128 : i32
    %33 = arith.addi %32, %c128_i32_12 : i32
    %c8_i32 = arith.constant 8 : i32
    %34 = arith.cmpi sle, %33, %c8_i32 : i32
    %35 = arith.extui %34 : i1 to i32
    %c0_i32_13 = arith.constant 0 : i32
    %36 = arith.cmpi ne, %35, %c0_i32_13 : i32
    scf.if %36 {
      %c0_17 = arith.constant 0 : index
      %c0_18 = arith.constant 0 : index
      %c0_19 = arith.constant 0 : index
      %41 = vector.load %arg4[%c0_17, %c0_18, %c0_19] : memref<1x1x128xf32, #tpu.memory_space<vmem>>, vector<1x1x128xf32>
      %42 = vector.shape_cast %41 : vector<1x1x128xf32> to vector<1x128xf32>
      %43 = arith.addf %42, %29 : vector<1x128xf32>
      %c0_20 = arith.constant 0 : index
      %c0_21 = arith.constant 0 : index
      %c0_22 = arith.constant 0 : index
      %44 = vector.load %arg4[%c0_20, %c0_21, %c0_22] : memref<1x1x128xf32, #tpu.memory_space<vmem>>, vector<1x1x128xf32>
      %45 = vector.shape_cast %44 : vector<1x1x128xf32> to vector<1x128xf32>
      %46 = vector.shape_cast %43 : vector<1x128xf32> to vector<1x1x128xf32>
      tpu.vector_store %arg4[%c0_20, %c0_21, %c0_22], %46 {strides = array<i32>} : memref<1x1x128xf32, #tpu.memory_space<vmem>>, vector<1x1x128xf32>,
    } else {
    }
    %c128_i32_14 = arith.constant 128 : i32
    %37 = arith.addi %32, %c128_i32_14 : i32
    %c8_i32_15 = arith.constant 8 : i32
    %38 = arith.cmpi sgt, %37, %c8_i32_15 : i32
    %39 = arith.extui %38 : i1 to i32
    %c0_i32_16 = arith.constant 0 : i32
    %40 = arith.cmpi ne, %39, %c0_i32_16 : i32
    scf.if %40 {
      %41 = tpu.iota {dimensions = array<i32: 0>} : vector<1x128xi32>
      %42 = tpu.iota {dimensions = array<i32: 1>} : vector<1x128xi32>
      %c128_i32_17 = arith.constant 128 : i32
      %43 = vector.broadcast %c128_i32_17 : i32 to vector<1x128xi32>
      %44 = arith.muli %41, %43 : vector<1x128xi32>
      %45 = vector.broadcast %32 : i32 to vector<1x128xi32>
      %46 = arith.addi %45, %44 : vector<1x128xi32>
      %47 = arith.addi %46, %42 : vector<1x128xi32>
      %c0_18 = arith.constant 0 : index
      %c0_19 = arith.constant 0 : index
      %c0_20 = arith.constant 0 : index
      %48 = vector.load %arg4[%c0_18, %c0_19, %c0_20] : memref<1x1x128xf32, #tpu.memory_space<vmem>>, vector<1x1x128xf32>
      %49 = vector.shape_cast %48 : vector<1x1x128xf32> to vector<1x128xf32>
      %c8_i32_21 = arith.constant 8 : i32
      %50 = vector.broadcast %c8_i32_21 : i32 to vector<1x128xi32>
      %51 = arith.cmpi slt, %47, %50 : vector<1x128xi32>
      %cst_22 = arith.constant 0.000000e+00 : f32
      %52 = vector.broadcast %cst_22 : f32 to vector<1x128xf32>
      %53 = arith.select %51, %29, %52 : vector<1x128xi1>, vector<1x128xf32>
      %54 = arith.addf %49, %53 : vector<1x128xf32>
      %c0_23 = arith.constant 0 : index
      %c0_24 = arith.constant 0 : index
      %c0_25 = arith.constant 0 : index
      %55 = vector.load %arg4[%c0_23, %c0_24, %c0_25] : memref<1x1x128xf32, #tpu.memory_space<vmem>>, vector<1x1x128xf32>
      %56 = vector.shape_cast %55 : vector<1x1x128xf32> to vector<1x128xf32>
      %57 = vector.shape_cast %54 : vector<1x128xf32> to vector<1x1x128xf32>
      tpu.vector_store %arg4[%c0_23, %c0_24, %c0_25], %57 {strides = array<i32>} : memref<1x1x128xf32, #tpu.memory_space<vmem>>, vector<1x1x128xf32>,
    } else {
    }
    return
  }
  func.func @transform_0(%arg0: i32, %arg1: i32) -> (i32, i32, i32) {
    %c1_i32 = arith.constant 1 : i32
    %0 = arith.muli %arg0, %c1_i32 : i32
    %1 = arith.addi %0, %arg1 : i32
    %c0_i32 = arith.constant 0 : i32
    %2 = arith.minsi %1, %c0_i32 : i32
    %c0_i32_0 = arith.constant 0 : i32
    %c0_i32_1 = arith.constant 0 : i32
    %c0_i32_2 = arith.constant 0 : i32
    return %c0_i32_0, %2, %c0_i32_1 : i32, i32, i32
  }
  func.func @transform_1(%arg0: i32, %arg1: i32) -> (i32, i32) {
    %c1_i32 = arith.constant 1 : i32
    %0 = arith.muli %arg0, %c1_i32 : i32
    %1 = arith.addi %0, %arg1 : i32
    %c0_i32 = arith.constant 0 : i32
    %2 = arith.minsi %1, %c0_i32 : i32
    %c0_i32_0 = arith.constant 0 : i32
    %c0_i32_1 = arith.constant 0 : i32
    return %2, %c0_i32_0 : i32, i32
  }
  func.func @transform_2(%arg0: i32, %arg1: i32) -> (i32, i32, i32) {
    %c0_i32 = arith.constant 0 : i32
    %c0_i32_0 = arith.constant 0 : i32
    %c0_i32_1 = arith.constant 0 : i32
    return %arg0, %c0_i32, %c0_i32_0 : i32, i32, i32
  }
}

</mosaic_0001>

<llo_original>
// kernel: symmetric_cross_entropy.1
$region0: #{symmetric_cross_entropy.1}
  #allocation0 [shape = 'u32[]', space=smem, size = 0x4, offset = 0x4, fixed_abs, tag = 'smem constant byte address 0x4 - core index']
  #allocation1 [shape = 'u32[144,128]{1,0:T(1,128)}', space=vmem, size = 0x12000, scoped, tag = 'internal scratch']
  %s0 = inlined_call_operand.vmem [shape: f32[5,1,128], index: 0, kind: input, shape index: {}]
  %s1 = inlined_call_operand.vmem [shape: s32[1,128], index: 1, kind: input, shape index: {}]
  %s2 = inlined_call_operand.vmem [shape: f32[1,1,128], index: 2, kind: output, shape index: {}]
  %s3 = sld [smem:[#allocation0]]
  $region30: #{symmetric_cross_entropy.1} parent=0
    _
  %s5 = ssub.s32 1, %s3
  %s6 = scalar_select 0, %s5, %s3
  // Predicated region
  $region2: #{symmetric_cross_entropy.1} parent=0 // pred_check
    _
  $region3: #{symmetric_cross_entropy.1} parent=0 // pred_check_branch
    %8 = sbr.rel (0) target = $region5
  $region4: #{symmetric_cross_entropy.1} parent=0 // pred_region
    %s9 = sadd.s32 0, 0
    %p10 = scmp.lt.s32.totalorder %s9, 0
    %s11 = scalar_select %p10, %s9, 0
    %p12 = scmp.lt.s32.totalorder %s11, 0
    %s13 = scalar_select %p12, %s11, 0
    %s14 = scalar_lea.vmem %s0, %s13
    %s15 = sadd.s32 0, 0
    %p16 = scmp.lt.s32.totalorder %s15, 0
    %s17 = scalar_select %p16, %s15, 0
  $region5: #{symmetric_cross_entropy.1} parent=0 // pred_fallthru
    _
  // Predicated region
  $region6: #{symmetric_cross_entropy.1} parent=0 // pred_check
    _
  $region7: #{symmetric_cross_entropy.1} parent=0 // pred_check_branch
    %19 = sbr.rel (0) target = $region9
  $region8: #{symmetric_cross_entropy.1} parent=0 // pred_region
    %s20 = sadd.s32 0, 0
    %p21 = scmp.lt.s32.totalorder %s20, 0
    %s22 = scalar_select %p21, %s20, 0
    %p23 = scmp.lt.s32.totalorder %s22, 0
    %s24 = scalar_select %p23, %s22, 0
    %s25 = scalar_lea.vmem %s1, %s24
    %s26 = sadd.s32 0, 0
    %p27 = scmp.lt.s32.totalorder %s26, 0
    %s28 = scalar_select %p27, %s26, 0
  $region9: #{symmetric_cross_entropy.1} parent=0 // pred_fallthru
    _
  %s29 = sadd.s32 0, 0
  %p30 = scmp.lt.s32.totalorder %s29, 0
  %s31 = scalar_select %p30, %s29, 0
  %p32 = scmp.lt.s32.totalorder %s31, 0
  %s33 = scalar_select %p32, %s31, 0
  %s34 = scalar_lea.vmem %s0, %s33
  %s35 = sadd.s32 0, 0
  %p36 = scmp.lt.s32.totalorder %s35, 0
  %s37 = scalar_select %p36, %s35, 0
  %p38 = scmp.lt.s32.totalorder %s37, 0
  %s39 = scalar_select %p38, %s37, 0
  %s40 = scalar_lea.vmem %s1, %s39
  %s41 = sadd.s32 0, 0
  %p42 = scmp.lt.s32.totalorder %s41, 0
  %s43 = scalar_select %p42, %s41, 0
  %p44 = scmp.lt.s32.totalorder %s43, 0
  %s45 = scalar_select %p44, %s43, 0
  %s46 = scalar_lea.vmem %s0, %s45
  %s47 = sadd.s32 0, 0
  %p48 = scmp.lt.s32.totalorder %s47, 0
  %s49 = scalar_select %p48, %s47, 0
  %s50 = sadd.s32 0, 0
  %p51 = scmp.lt.s32.totalorder %s50, 0
  %s52 = scalar_select %p51, %s50, 0
  %p53 = scmp.lt.s32.totalorder %s52, 0
  %s54 = scalar_select %p53, %s52, 0
  %s55 = scalar_lea.vmem %s1, %s54
  %s56 = sadd.s32 0, 0
  %p57 = scmp.lt.s32.totalorder %s56, 0
  %s58 = scalar_select %p57, %s56, 0
  %p59 = scmp.eq.s32.totalorder 0, 0
  // Predicated region
  $region10: #{symmetric_cross_entropy.1} parent=0 // pred_check
    %p60 = pneg %p59
  $region11: #{symmetric_cross_entropy.1} parent=0 // pred_check_branch
    %62 = sbr.rel (%p60) target = $region13
  $region12: #{symmetric_cross_entropy.1} parent=0 // pred_region
    %63 = vst [vmem:[%s2] sm:$0x1] 0.0
  $region13: #{symmetric_cross_entropy.1} parent=0 // pred_fallthru
    _
  %v64 = vld [vmem:[%s46] sm:$0x1]
  %v65 = vld [vmem:[%s46 + $0x1] sm:$0x1]
  %v66 = vld [vmem:[%s46 + $0x2] sm:$0x1]
  %v67 = vld [vmem:[%s46 + $0x3] sm:$0x1]
  %v68 = vld [vmem:[%s46 + $0x4] sm:$0x1]
  %v69 = vld [vmem:[%s55] sm:$0x1]
  %v70 = vlaneseq
  %vm71 = vcmp.ge.s32.totalorder %v70, 0
  %vm72 = vcmp.lt.s32.totalorder %v70, 128
  %vm73 = vmand %vm71, %vm72
  %v74 = vsel %vm73, %v64, -inf
  %v75 = vsel %vm73, %v65, -inf
  %v76 = vsel %vm73, %v66, -inf
  %v77 = vsel %vm73, %v67, -inf
  %v78 = vsel %vm73, %v68, -inf
  %v79 = vmax.f32 %v74, %v78
  %v80 = vmax.f32 %v79, %v75
  %v81 = vmax.f32 %v76, %v77
  %v82 = vmax.f32 %v80, %v81
  %v83 = vsub.f32 %v64, %v82
  %v84 = vsub.f32 %v65, %v82
  %v85 = vsub.f32 %v66, %v82
  %v86 = vsub.f32 %v67, %v82
  %v87 = vsub.f32 %v68, %v82
  %v88 = vmul.f32 %v83, 1.442695
  %v89 = vpow.pop %v88
  %v90 = vmul.f32 %v84, 1.442695
  %v91 = vpow.pop %v90
  %v92 = vmul.f32 %v85, 1.442695
  %v93 = vpow.pop %v92
  %v94 = vmul.f32 %v86, 1.442695
  %v95 = vpow.pop %v94
  %v96 = vmul.f32 %v87, 1.442695
  %v97 = vpow.pop %v96
  %vm98 = vcmask 1040384
  %v99 = vsel %vm98, %v89, 0.0
  %v100 = vsel %vm98, %v91, 0.0
  %v101 = vadd.f32 %v99, %v100
  %v102 = vsel %vm98, %v93, 0.0
  %v103 = vadd.f32 %v101, %v102
  %v104 = vsel %vm98, %v95, 0.0
  %v105 = vadd.f32 %v103, %v104
  %v106 = vsel %vm98, %v97, 0.0
  %v107 = vadd.f32 %v105, %v106
  %vm108 = vcmp.eq.s32.totalorder %v69, 0
  %vm109 = vcmp.eq.s32.totalorder %v69, 1
  %vm110 = vcmp.eq.s32.totalorder %v69, 2
  %vm111 = vcmp.eq.s32.totalorder %v69, 3
  %vm112 = vcmp.eq.s32.totalorder %v69, 4
  %v113 = vsel %vm108, %v64, 0.0
  %v114 = vsel %vm109, %v65, 0.0
  %v115 = vsel %vm110, %v66, 0.0
  %v116 = vsel %vm111, %v67, 0.0
  %v117 = vsel %vm112, %v68, 0.0
  %v118 = vsel %vm98, %v113, 0.0
  %v119 = vsel %vm98, %v114, 0.0
  %v120 = vadd.f32 %v118, %v119
  %v121 = vsel %vm98, %v115, 0.0
  %v122 = vadd.f32 %v120, %v121
  %v123 = vsel %vm98, %v116, 0.0
  %v124 = vadd.f32 %v122, %v123
  %v125 = vsel %vm98, %v117, 0.0
  %v126 = vadd.f32 %v124, %v125
  %v127 = vsub.f32 %v82, %v126
  %v128 = vlog2.pop %v107
  %v129 = vmul.f32 %v128, 0.6931472
  %v130 = vadd.f32 %v127, %v129
  %v131 = vmax.f32 %v130, 0.0
  %v132 = vmin.f32 %v131, 16.118095
  %v133 = vmul.f32 %v130, 0.5
  %v134 = vadd.f32 %v133, %v132
  %s135 = sadd.s32 0, 0
  %s136 = smul.u32 %s135, 128
  %s137 = sadd.s32 %s136, 128
  %p138 = scmp.le.s32.totalorder %s137, 8
  // Predicated region
  $region14: #{symmetric_cross_entropy.1} parent=0 // pred_check
    %p139 = pneg %p138
  $region15: #{symmetric_cross_entropy.1} parent=0 // pred_check_branch
    %141 = sbr.rel (%p139) target = $region17
  $region16: #{symmetric_cross_entropy.1} parent=0 // pred_region
    %v142 = vld [vmem:[%s2] sm:$0x1]
    %v143 = vadd.f32 %v142, %v134
    %144 = vst [vmem:[%s2] sm:$0x1] %v143
  $region17: #{symmetric_cross_entropy.1} parent=0 // pred_fallthru
    _
  %p145 = scmp.gt.s32.totalorder %s137, 8
  // Predicated region
  $region18: #{symmetric_cross_entropy.1} parent=0 // pred_check
    %p146 = pneg %p145
  $region19: #{symmetric_cross_entropy.1} parent=0 // pred_check_branch
    %148 = sbr.rel (%p146) target = $region21
  $region20: #{symmetric_cross_entropy.1} parent=0 // pred_region
    %v149 = vlaneseq
    %v150 = vshrl.u32 %v149, 7
    %v151 = vlaneseq
    %v152 = vand.u32 %v151, 127
    %v153 = vmul.u32 %v150, 128
    %v154 = vstv %s136
    %v155 = vadd.s32 %v154, %v153
    %v156 = vadd.s32 %v155, %v152
    %v157 = vld [vmem:[%s2] sm:$0x1]
    %vm158 = vcmp.lt.s32.totalorder %v156, 8
    %v159 = vsel %vm158, %v134, 0.0
    %v160 = vadd.f32 %v157, %v159
    %161 = vst [vmem:[%s2] sm:$0x1] %v160
  $region21: #{symmetric_cross_entropy.1} parent=0 // pred_fallthru
    _
  // Predicated region
  $region22: #{symmetric_cross_entropy.1} parent=0 // pred_check
    _
  $region23: #{symmetric_cross_entropy.1} parent=0 // pred_check_branch
    %163 = sbr.rel (0) target = $region25
  $region24: #{symmetric_cross_entropy.1} parent=0 // pred_region
    _
  $region25: #{symmetric_cross_entropy.1} parent=0 // pred_fallthru
    _
  // Predicated region
  $region26: #{symmetric_cross_entropy.1} parent=0 // pred_check
    _
  $region27: #{symmetric_cross_entropy.1} parent=0 // pred_check_branch
    %165 = sbr.rel (0) target = $region29
  $region28: #{symmetric_cross_entropy.1} parent=0 // pred_region
    _
  $region29: #{symmetric_cross_entropy.1} parent=0 // pred_fallthru
    _

</llo_original>
